<compile_context>
chip_gen: v5e
topology: v5e:2x2
jax: 0.10.0
libtpu: 0.0.40
codegen_flags: <defaults>
</compile_context>

<pallas_src>
import functools

import jax
import jax.numpy as jnp
from jax.experimental import pallas as pl
from jax.experimental.pallas import tpu as pltpu


def attn_pool_kernel(x_ref, w_ref, o_ref, m_sc, l_sc, acc_sc, *, seq_len, seq_padded):
    """Online-softmax attention pooling over seq chunks for one (Bt, St, H) tile.

    x_ref  : (Bt, St, H) input tile (VMEM)
    w_ref  : (1, H)      nn.Linear(H, 1) weight, lane-major, x dtype (VMEM)
    o_ref  : (Bt, H)     pooled output tile (VMEM), written at the last seq chunk
    m_sc   : (Bt, 1)     running max of scores        (fp32 scratch)
    l_sc   : (Bt, 1)     running softmax denominator  (fp32 scratch)
    acc_sc : (Bt, H)     running exp-weighted sum     (fp32 scratch)
    """
    j = pl.program_id(1)
    Bt, St, H = x_ref.shape

    @pl.when(j == 0)
    def _init():
        m_sc[...] = jnp.full(m_sc.shape, -jnp.inf, jnp.float32)
        l_sc[...] = jnp.zeros(l_sc.shape, jnp.float32)
        acc_sc[...] = jnp.zeros(acc_sc.shape, jnp.float32)

    x = x_ref[...]                                    # (Bt, St, H)
    w = w_ref[...]                                    # (1, H), same dtype as x

    # scores[b, s] = <x[b, s, :], w>   (VPU multiply + lane reduction over H; the
    # scalar bias of the PyTorch Linear is dropped: softmax is shift-invariant).
    s = jnp.sum((x * w).astype(jnp.float32), axis=-1)          # (Bt, St), dense

    if seq_padded:
        # Mask zero-padded seq positions (only the last chunk can contain padding).
        idx = j * St + jax.lax.broadcasted_iota(jnp.int32, (Bt, St), 1)
        s = jnp.where(idx < seq_len, s, -jnp.inf)

    # Online softmax over the sequence axis.
    m_prev = m_sc[...]                                          # (Bt, 1)
    m_new = jnp.maximum(m_prev, jnp.max(s, axis=-1, keepdims=True))
    alpha = jnp.exp(m_prev - m_new)                             # (Bt, 1)
    p = jnp.exp(s - m_new)                                      # (Bt, St), dense exp

    l_sc[...] = alpha * l_sc[...] + jnp.sum(p, axis=-1, keepdims=True)

    # Exp-weighted partial sum on the MXU: contraction over s (= sublane dim of x as
    # RHS) -> no transpose of the x tile; M=1 per batch row is fine (HBM-bound kernel).
    part = jnp.einsum(
        "bqs,bsh->bqh",
        p.reshape(Bt, 1, St).astype(x.dtype), x,
        preferred_element_type=jnp.float32)                     # (Bt, 1, H)
    acc_sc[...] = alpha * acc_sc[...] + part.reshape(Bt, H)
    m_sc[...] = m_new

    @pl.when(j == pl.num_programs(1) - 1)
    def _finalize():
        # Exact divide: runs once per batch tile, cost negligible vs. DMA.
        o_ref[...] = (acc_sc[...] / l_sc[...]).astype(o_ref.dtype)


def _round_up(n, m):
    return -(-n // m) * m


def attention_pooling(x, w, b=None, *, tile_bytes_target=6 * 1024 * 1024):
    """x: (B, S, H); w: (1, H) (= nn.Linear(H, 1).weight); b ignored (shift-invariant).

    Returns (B, H) = sum_s softmax_s(x @ w.T + b) * x, matching the PyTorch module.
    """
    del b  # softmax over seq is shift-invariant to the scalar bias
    B, S, H = x.shape
    assert w.shape == (1, H)

    itemsize = jnp.dtype(x.dtype).itemsize
    # Sublane alignment of the second-minor block dim for this dtype's packing.
    sub_align = max(8, 32 // itemsize)          # 8 for f32, 16 for bf16, 32 for int8

    # ---- Batch tile first (sublane-dense stats); >=2 batch grid steps when B > 8 so
    #      both v7x TensorCores get work via the "parallel" batch axis. ----
    if B > 8:
        Bt = 8                                   # multiple of 8 -> dense (Bt, H) stores
    else:
        Bt = B                                   # full-extent block: always layout-legal
    B_pad = _round_up(B, Bt)

    # ---- Seq chunk fills the remaining per-step byte budget (online softmax bounds
    #      VMEM regardless of S). ----
    bytes_per_seq_row = max(Bt * H * itemsize, 1)
    St = max(sub_align,
             (tile_bytes_target // bytes_per_seq_row) // sub_align * sub_align)
    St = min(St, _round_up(S, sub_align))
    S_pad = _round_up(S, St)
    seq_padded = (S_pad != S)

    grid = (B_pad // Bt, S_pad // St)

    # ---- Zero-pad to the tile grid (padded seq positions are masked in-kernel;
    #      padded batch rows are sliced off below). ----
    x_p = x
    if B_pad != B or S_pad != S:
        x_p = jnp.pad(x, ((0, B_pad - B), (0, S_pad - S), (0, 0)))
    w_c = w.astype(x.dtype)                      # cast once, outside the kernel

    # ---- Scoped-VMEM limit from the actual (padded, double-buffered) blocks, capped
    #      well below physical VMEM (v7x-safe), not clamped to an arbitrary 64 MiB. ----
    h_lanes = _round_up(H, 128)
    x_blk = Bt * St * h_lanes * itemsize
    o_blk = _round_up(Bt, 8) * h_lanes * itemsize
    w_blk = 8 * h_lanes * itemsize
    scratch = _round_up(Bt, 8) * (2 * 128 + h_lanes) * 4
    vmem_needed = 2 * (x_blk + o_blk + w_blk) + scratch + (2 << 20)
    try:
        phys_vmem = int(pltpu.get_tpu_info().vmem_capacity_bytes)
    except Exception:
        phys_vmem = 64 << 20                     # conservative (v7x per-TC VMEM)
    vmem_limit = int(min(max(vmem_needed, 8 << 20), int(phys_vmem * 0.8)))

    out = pl.pallas_call(
        functools.partial(attn_pool_kernel, seq_len=S, seq_padded=seq_padded),
        out_shape=jax.ShapeDtypeStruct((B_pad, H), x.dtype),
        grid_spec=pltpu.PrefetchScalarGridSpec(
            num_scalar_prefetch=0,
            grid=grid,
            in_specs=[
                pl.BlockSpec((Bt, St, H), lambda i, j: (i, j, 0)),
                pl.BlockSpec((1, H), lambda i, j: (0, 0)),
            ],
            out_specs=pl.BlockSpec((Bt, H), lambda i, j: (i, 0)),
            scratch_shapes=[
                pltpu.VMEM((Bt, 1), jnp.float32),   # running max
                pltpu.VMEM((Bt, 1), jnp.float32),   # running denom
                pltpu.VMEM((Bt, H), jnp.float32),   # running weighted sum
            ],
        ),
        compiler_params=pltpu.CompilerParams(
            dimension_semantics=("parallel", "arbitrary"),
            vmem_limit_bytes=vmem_limit,
        ),
    )(x_p, w_c)
    return out[:B]


def attention_pooling_ref(x, w, b):
    """Pure-JAX reference matching the PyTorch forward (bias included)."""
    scores = jnp.einsum("bsh,oh->bso", x, w) + b[0, 0]   # (B, S, 1)
    weights = jax.nn.softmax(scores, axis=1)             # softmax over seq
    return jnp.sum(weights * x, axis=1)                  # (B, H)


if __name__ == "__main__":
    B, S, H = 2, 8, 32  # small shapes: batch=2, seq=8, hidden=32

    key = jax.random.PRNGKey(0)
    kx, kw, kb = jax.random.split(key, 3)

    x = jax.random.normal(kx, (B, S, H), dtype=jnp.float32)
    # nn.Linear(hidden_dim, 1): weight (1, H) (lane-major), bias (1,) stored as (1, 1).
    w = (jax.random.uniform(kw, (1, H), dtype=jnp.float32) - 0.5) * (2.0 / (H ** 0.5))
    b = (jax.random.uniform(kb, (1, 1), dtype=jnp.float32) - 0.5) * (2.0 / (H ** 0.5))

    out = jax.block_until_ready(attention_pooling(x, w, b))
    ref = attention_pooling_ref(x, w, b)

    assert out.shape == (B, H)
    assert jnp.allclose(out, ref, atol=1e-4, rtol=1e-4), "mismatch vs reference"

    print("KERNEL_OK")
</pallas_src>

<mosaic_0001>
module attributes {stable_mosaic.version = 11 : i64} {
  func.func @attn_pool_kernel(%arg0: i32, %arg1: i32, %arg2: memref<2x8x32xf32, #tpu.memory_space<vmem>>, %arg3: memref<1x32xf32, #tpu.memory_space<vmem>>, %arg4: memref<2x32xf32, #tpu.memory_space<vmem>>, %arg5: memref<2x1xf32, #tpu.memory_space<vmem>>, %arg6: memref<2x1xf32, #tpu.memory_space<vmem>>, %arg7: memref<2x32xf32, #tpu.memory_space<vmem>>) attributes {dimension_semantics = [#tpu.dimension_semantics<parallel>, #tpu.dimension_semantics<arbitrary>], iteration_bounds = array<i64: 1, 1>, scalar_prefetch = 0 : i64, scratch_operands = 3 : i64, tpu.core_type = #tpu.core_type<tc>, window_params = [{transform_indices = @transform_0, window_bounds = array<i64: 2, 8, 32>}, {pipeline_mode = #tpu.pipeline_mode<synchronous>, transform_indices = @transform_1, window_bounds = array<i64: 1, 32>}, {transform_indices = @transform_2, window_bounds = array<i64: 2, 32>}]} {
    %c0_i32 = arith.constant 0 : i32
    %0 = arith.cmpi eq, %arg1, %c0_i32 : i32
    %1 = arith.extui %0 : i1 to i32
    %c0_i32_0 = arith.constant 0 : i32
    %2 = arith.cmpi ne, %1, %c0_i32_0 : i32
    scf.if %2 {
      %cst_22 = arith.constant 0xFF800000 : f32
      %36 = vector.broadcast %cst_22 : f32 to vector<2x1xf32>
      %c0_23 = arith.constant 0 : index
      %c0_24 = arith.constant 0 : index
      %37 = vector.load %arg5[%c0_23, %c0_24] : memref<2x1xf32, #tpu.memory_space<vmem>>, vector<2x1xf32>
      tpu.vector_store %arg5[%c0_23, %c0_24], %36 {strides = array<i32>} : memref<2x1xf32, #tpu.memory_space<vmem>>, vector<2x1xf32>,
      %cst_25 = arith.constant 0.000000e+00 : f32
      %38 = vector.broadcast %cst_25 : f32 to vector<2x1xf32>
      %c0_26 = arith.constant 0 : index
      %c0_27 = arith.constant 0 : index
      %39 = vector.load %arg6[%c0_26, %c0_27] : memref<2x1xf32, #tpu.memory_space<vmem>>, vector<2x1xf32>
      tpu.vector_store %arg6[%c0_26, %c0_27], %38 {strides = array<i32>} : memref<2x1xf32, #tpu.memory_space<vmem>>, vector<2x1xf32>,
      %cst_28 = arith.constant 0.000000e+00 : f32
      %40 = vector.broadcast %cst_28 : f32 to vector<2x32xf32>
      %c0_29 = arith.constant 0 : index
      %c0_30 = arith.constant 0 : index
      %41 = vector.load %arg7[%c0_29, %c0_30] : memref<2x32xf32, #tpu.memory_space<vmem>>, vector<2x32xf32>
      tpu.vector_store %arg7[%c0_29, %c0_30], %40 {strides = array<i32>} : memref<2x32xf32, #tpu.memory_space<vmem>>, vector<2x32xf32>,
    } else {
    }
    %c0 = arith.constant 0 : index
    %c0_1 = arith.constant 0 : index
    %c0_2 = arith.constant 0 : index
    %3 = vector.load %arg2[%c0, %c0_1, %c0_2] : memref<2x8x32xf32, #tpu.memory_space<vmem>>, vector<2x8x32xf32>
    %c0_3 = arith.constant 0 : index
    %c0_4 = arith.constant 0 : index
    %4 = vector.load %arg3[%c0_3, %c0_4] : memref<1x32xf32, #tpu.memory_space<vmem>>, vector<1x32xf32>
    %5 = vector.shape_cast %4 : vector<1x32xf32> to vector<1x1x32xf32>
    %6 = vector.broadcast %5 : vector<1x1x32xf32> to vector<2x8x32xf32>
    %7 = arith.mulf %3, %6 : vector<2x8x32xf32>
    %cst = arith.constant dense<0.000000e+00> : vector<2x8xf32>
    %8 = vector.multi_reduction <add>, %7, %cst [2] : vector<2x8x32xf32> to vector<2x8xf32>
    %c0_5 = arith.constant 0 : index
    %c0_6 = arith.constant 0 : index
    %9 = vector.load %arg5[%c0_5, %c0_6] : memref<2x1xf32, #tpu.memory_space<vmem>>, vector<2x1xf32>
    %cst_7 = arith.constant dense<0xFF800000> : vector<2xf32>
    %10 = vector.multi_reduction <maximumf>, %8, %cst_7 [1] : vector<2x8xf32> to vector<2xf32>
    %11 = vector.shape_cast %10 : vector<2xf32> to vector<2x1xf32>
    %12 = arith.maximumf %9, %11 : vector<2x1xf32>
    %13 = arith.subf %9, %12 : vector<2x1xf32>
    %14 = math.exp %13 : vector<2x1xf32>
    %15 = vector.broadcast %12 : vector<2x1xf32> to vector<2x8xf32>
    %16 = arith.subf %8, %15 : vector<2x8xf32>
    %17 = math.exp %16 : vector<2x8xf32>
    %c0_8 = arith.constant 0 : index
    %c0_9 = arith.constant 0 : index
    %18 = vector.load %arg6[%c0_8, %c0_9] : memref<2x1xf32, #tpu.memory_space<vmem>>, vector<2x1xf32>
    %19 = arith.mulf %14, %18 : vector<2x1xf32>
    %cst_10 = arith.constant dense<0.000000e+00> : vector<2xf32>
    %20 = vector.multi_reduction <add>, %17, %cst_10 [1] : vector<2x8xf32> to vector<2xf32>
    %21 = vector.shape_cast %20 : vector<2xf32> to vector<2x1xf32>
    %22 = arith.addf %19, %21 : vector<2x1xf32>
    %c0_11 = arith.constant 0 : index
    %c0_12 = arith.constant 0 : index
    %23 = vector.load %arg6[%c0_11, %c0_12] : memref<2x1xf32, #tpu.memory_space<vmem>>, vector<2x1xf32>
    tpu.vector_store %arg6[%c0_11, %c0_12], %22 {strides = array<i32>} : memref<2x1xf32, #tpu.memory_space<vmem>>, vector<2x1xf32>,
    %24 = vector.shape_cast %17 : vector<2x8xf32> to vector<2x1x8xf32>
    "tpu.trace_start"() <{level = 10 : i32, message = "bqs,bsh->bqh"}> : () -> ()
    %cst_13 = arith.constant dense<0.000000e+00> : vector<2x1x32xf32>
    %25 = tpu.matmul %24, %3, %cst_13 {dimension_numbers = #tpu.dot_dimension_numbers<[2], [1], [1], [2], [0, 0, 0, 1, 1, 2], [0], [0]>} : vector<2x1x8xf32>, vector<2x8x32xf32>, vector<2x1x32xf32> -> vector<2x1x32xf32>
    "tpu.trace_stop"() : () -> ()
    %c0_14 = arith.constant 0 : index
    %c0_15 = arith.constant 0 : index
    %26 = vector.load %arg7[%c0_14, %c0_15] : memref<2x32xf32, #tpu.memory_space<vmem>>, vector<2x32xf32>
    %27 = vector.broadcast %14 : vector<2x1xf32> to vector<2x32xf32>
    %28 = arith.mulf %27, %26 : vector<2x32xf32>
    %29 = vector.shape_cast %25 : vector<2x1x32xf32> to vector<2x32xf32>
    %30 = arith.addf %28, %29 : vector<2x32xf32>
    %c0_16 = arith.constant 0 : index
    %c0_17 = arith.constant 0 : index
    %31 = vector.load %arg7[%c0_16, %c0_17] : memref<2x32xf32, #tpu.memory_space<vmem>>, vector<2x32xf32>
    tpu.vector_store %arg7[%c0_16, %c0_17], %30 {strides = array<i32>} : memref<2x32xf32, #tpu.memory_space<vmem>>, vector<2x32xf32>,
    %c0_18 = arith.constant 0 : index
    %c0_19 = arith.constant 0 : index
    %32 = vector.load %arg5[%c0_18, %c0_19] : memref<2x1xf32, #tpu.memory_space<vmem>>, vector<2x1xf32>
    tpu.vector_store %arg5[%c0_18, %c0_19], %12 {strides = array<i32>} : memref<2x1xf32, #tpu.memory_space<vmem>>, vector<2x1xf32>,
    %c0_i32_20 = arith.constant 0 : i32
    %33 = arith.cmpi eq, %arg1, %c0_i32_20 : i32
    %34 = arith.extui %33 : i1 to i32
    %c0_i32_21 = arith.constant 0 : i32
    %35 = arith.cmpi ne, %34, %c0_i32_21 : i32
    scf.if %35 {
      %c0_22 = arith.constant 0 : index
      %c0_23 = arith.constant 0 : index
      %36 = vector.load %arg7[%c0_22, %c0_23] : memref<2x32xf32, #tpu.memory_space<vmem>>, vector<2x32xf32>
      %c0_24 = arith.constant 0 : index
      %c0_25 = arith.constant 0 : index
      %37 = vector.load %arg6[%c0_24, %c0_25] : memref<2x1xf32, #tpu.memory_space<vmem>>, vector<2x1xf32>
      %38 = vector.broadcast %37 : vector<2x1xf32> to vector<2x32xf32>
      %39 = arith.divf %36, %38 : vector<2x32xf32>
      %c0_26 = arith.constant 0 : index
      %c0_27 = arith.constant 0 : index
      %40 = vector.load %arg4[%c0_26, %c0_27] : memref<2x32xf32, #tpu.memory_space<vmem>>, vector<2x32xf32>
      tpu.vector_store %arg4[%c0_26, %c0_27], %39 {strides = array<i32>} : memref<2x32xf32, #tpu.memory_space<vmem>>, vector<2x32xf32>,
    } else {
    }
    return
  }
  func.func @transform_0(%arg0: i32, %arg1: i32) -> (i32, i32, i32) {
    %c0_i32 = arith.constant 0 : i32
    %c0_i32_0 = arith.constant 0 : i32
    return %arg0, %arg1, %c0_i32 : i32, i32, i32
  }
  func.func @transform_1(%arg0: i32, %arg1: i32) -> (i32, i32) {
    %c0_i32 = arith.constant 0 : i32
    %c0_i32_0 = arith.constant 0 : i32
    %c0_i32_1 = arith.constant 0 : i32
    return %c0_i32, %c0_i32_0 : i32, i32
  }
  func.func @transform_2(%arg0: i32, %arg1: i32) -> (i32, i32) {
    %c0_i32 = arith.constant 0 : i32
    %c0_i32_0 = arith.constant 0 : i32
    return %arg0, %c0_i32 : i32, i32
  }
}

</mosaic_0001>

<llo_original>
// kernel: tpu_custom_call.1
$region0: #{tpu_custom_call.1}
  #allocation0 [shape = 'u32[]', space=smem, size = 0x4, offset = 0x4, fixed_abs, tag = 'smem constant byte address 0x4 - core index']
  #allocation1 [shape = 'u32[72,128]{1,0:T(1,128)}', space=vmem, size = 0x9000, scoped, tag = 'internal scratch']
  #allocation2 [shape = 'f32[2,1]{1,0:T(2,128)}', space=vmem, size = 0x400, scoped, tag = 'scratch operand']
  #allocation3 [shape = 'f32[2,1]{1,0:T(2,128)}', space=vmem, size = 0x400, scoped, tag = 'scratch operand']
  #allocation4 [shape = 'f32[2,32]{1,0:T(2,128)}', space=vmem, size = 0x400, scoped, tag = 'scratch operand']
  %s0 = inlined_call_operand.hbm [shape: f32[2,8,32], index: 0, kind: input, shape index: {}]
  %s1 = inlined_call_operand.hbm [shape: f32[1,32], index: 1, kind: input, shape index: {}]
  %s2 = inlined_call_operand.hbm [shape: f32[2,32], index: 2, kind: output, shape index: {}]
  %s3 = sld [smem:[#allocation0]]
  $region34: #{tpu_custom_call.1} parent=0
    _
  %s5 = ssub.s32 1, %s3
  %s6 = scalar_select 0, %s5, %s3
  $region1: #{tpu_custom_call.1} parent=0
    #allocation5 [shape = 'u8[8192]{0}', space=vmem, size = 0x2000, scoped, tag = 'input window, operand 0, single buffered']
    #allocation6 [shape = 's32[1]{0}', space=sflag, size = 0x4, scoped, tag = 'scoped memory for tpu_custom_call.1']
    #allocation7 [shape = 's32[1]{0}', space=sflag, size = 0x4, scoped, tag = 'scoped memory for tpu_custom_call.1']
    #allocation8 [shape = 'u8[512]{0}', space=vmem, size = 0x400, scoped, tag = 'input window, operand 1, single buffered']
    #allocation9 [shape = 's32[1]{0}', space=sflag, size = 0x4, scoped, tag = 'scoped memory for tpu_custom_call.1']
    #allocation10 [shape = 'u8[1024]{0}', space=vmem, size = 0x400, scoped, tag = 'output window, operand 0, single buffered']
    %7 = vsyncpa [#allocation6], 0
    %8 = vsyncpa [#allocation9], 0
    %9 = vsyncpa [#allocation7], 0
    // Predicated region
    $region2: #{tpu_custom_call.1} parent=1 // pred_check
      _
    $region3: #{tpu_custom_call.1} parent=1 // pred_check_branch
      %11 = sbr.rel (0) target = $region5
    $region4: #{tpu_custom_call.1} parent=1 // pred_region
      %13 = vsyncadd [#allocation6], 0
      %s14 = sshll.u32 %s0, 4
      %s15 = int_to_ptr.hbm [resolvable:$true] %s14
      %s16 = sshll.u32 [#allocation5], 4
      %s17 = int_to_ptr.vmem [resolvable:$true] %s16
      %22 = dma.hbm_to_vmem [thread:$0]  %s15, 256, %s17, [#allocation6], 128, 128, 8
    $region5: #{tpu_custom_call.1} parent=1 // pred_fallthru
      _
    // Predicated region
    $region6: #{tpu_custom_call.1} parent=1 // pred_check
      _
    $region7: #{tpu_custom_call.1} parent=1 // pred_check_branch
      %24 = sbr.rel (0) target = $region9
    $region8: #{tpu_custom_call.1} parent=1 // pred_region
      %26 = vsyncadd [#allocation9], 0
      %s28 = sshll.u32 %s1, 4
      %s29 = int_to_ptr.hbm [resolvable:$true] %s28
      %s30 = sshll.u32 [#allocation8], 4
      %s31 = int_to_ptr.vmem [resolvable:$true] %s30
      %33 = dma.hbm_to_vmem [thread:$0]  %s29, 16, %s31, [#allocation9]
    $region9: #{tpu_custom_call.1} parent=1 // pred_fallthru
      _
    // Predicated region
    $region10: #{tpu_custom_call.1} parent=1 // pred_check
      _
    $region11: #{tpu_custom_call.1} parent=1 // pred_check_branch
      %35 = sbr.rel (0) target = $region13
    $region12: #{tpu_custom_call.1} parent=1 // pred_region
      %37 = dma.done [#allocation6], 256
    $region13: #{tpu_custom_call.1} parent=1 // pred_fallthru
      _
    // Predicated region
    $region14: #{tpu_custom_call.1} parent=1 // pred_check
      _
    $region15: #{tpu_custom_call.1} parent=1 // pred_check_branch
      %39 = sbr.rel (0) target = $region17
    $region16: #{tpu_custom_call.1} parent=1 // pred_region
      %41 = dma.done [#allocation9], 16
    $region17: #{tpu_custom_call.1} parent=1 // pred_fallthru
      _
    %p42 = scmp.eq.s32.totalorder 0, 0
    // Predicated region
    $region18: #{tpu_custom_call.1} parent=1 // pred_check
      %p43 = pneg %p42
    $region19: #{tpu_custom_call.1} parent=1 // pred_check_branch
      %45 = sbr.rel (%p43) target = $region21
    $region20: #{tpu_custom_call.1} parent=1 // pred_region
      %vm46 = vcmask 1024
      %47 = vst.msk [vmem:[#allocation2] sm:$0x3] %vm46, -inf
      %48 = vst.msk [vmem:[#allocation3] sm:$0x3] %vm46, 0.0
      %vm49 = vcmask 254976
      %50 = vst.msk [vmem:[#allocation4] sm:$0x3] %vm49, 0.0
    $region21: #{tpu_custom_call.1} parent=1 // pred_fallthru
      _
    %v51 = vld [vmem:[#allocation5] sm:$0xff]
    %v52 = vld [vmem:[#allocation5 + $0x8] sm:$0xff]
    %v53 = vld [vmem:[#allocation8] sm:$0x1]
    %v55 = vperm.slane %v53, 0
    %v57 = vmul.f32 %v51, %v55
    %v58 = vmul.f32 %v52, %v55
    %vm59 = vcmask 261120
    %v60 = vsel %vm59, %v57, 0.0
    %61 = vadd.xlane.f32.xlu0 %v60
    %v62 = vpop.xlane.xlu0 %61
    %v63 = vsel %vm59, %v58, 0.0
    %64 = vadd.xlane.f32.xlu0 %v63
    %v65 = vpop.xlane.xlu0 %64
    %v66 = vld [vmem:[#allocation2] sm:$0x3]
    %v69 = vlaneseq
    %v70 = vand.u32 %v69, 127
    %v71 = vperm.slane %v62, %v70
    %v72 = vperm.slane %v65, %v70
    %vm73 = vcmask 1041409
    %v74 = vsel %vm73, %v72, %v71
    %vm76 = vcmask 58368
    %v77 = vsel %vm76, %v74, -inf
    %78 = vmax.xlane.f32.xlu0 %v77
    %v79 = vpop.xlane.xlu0 %78
    %v80 = vmax.f32 %v66, %v79
    %v81 = vsub.f32 %v66, %v80
    %v82 = vmul.f32 %v81, 1.442695
    %v83 = vpow.pop %v82
    %85 = vset.pattern.permute.xlu0 0
    %86 = vperm.xlu0 %85, %v80
    %v87 = vpop.permute.xlu0 %86
    %v88 = vperm.slane %v87, 0
    %v89 = vperm.slane %v87, 1
    %v92 = vsub.f32 %v62, %v88
    %v93 = vsub.f32 %v65, %v89
    %v94 = vmul.f32 %v92, 1.442695
    %v95 = vpow.pop %v94
    %v96 = vmul.f32 %v93, 1.442695
    %v97 = vpow.pop %v96
    %v98 = vld [vmem:[#allocation3] sm:$0x3]
    %v99 = vmul.f32 %v83, %v98
    %102 = vset.pattern.permute.xlu0 0
    %103 = vperm.xlu0 %102, %v95
    %v104 = vpop.permute.xlu0 %103
    %105 = vset.pattern.permute.xlu0 0
    %106 = vperm.xlu0 %105, %v97
    %v107 = vpop.permute.xlu0 %106
    %v108 = vperm.slane %v104, %v70
    %v109 = vperm.slane %v107, %v70
    %v110 = vsel %vm73, %v109, %v108
    %v112 = vsel %vm76, %v110, 0.0
    %113 = vadd.xlane.f32.xlu0 %v112
    %v114 = vpop.xlane.xlu0 %113
    %v115 = vadd.f32 %v99, %v114
    %vm116 = vcmask 1024
    %117 = vst.msk [vmem:[#allocation3] sm:$0x3] %vm116, %v115
    %vm118 = vcmask 64512
    %v119 = vsel %vm118, %v108, 0
    %121 = vmatpush.msra.mxu0 0.0
    %122 = vmatpush.msra.mxu0 0.0
    %123 = vmatpush.msra.mxu0 0.0
    %124 = vmatpush.msra.mxu0 0.0
    %125 = vmatpush.msra.mxu0 0.0
    %126 = vmatpush.msra.mxu0 0.0
    %127 = vmatpush.msra.mxu0 0.0
    %128 = vmatpush.msra.mxu0 0.0
    %129 = vmatpush.msra.mxu0 0.0
    %130 = vmatpush.msra.mxu0 0.0
    %131 = vmatpush.msra.mxu0 0.0
    %132 = vmatpush.msra.mxu0 0.0
    %133 = vmatpush.msra.mxu0 0.0
    %134 = vmatpush.msra.mxu0 0.0
    %135 = vmatpush.msra.mxu0 0.0
    %136 = vmatpush.msra.mxu0 %v51
    %137 = vmatmul.f32.gmra.mxu0 %v119
    %v138 = vpop.f32.mrf.mxu0
    %v139 = vadd.f32 0.0, %v138
    %140 = vdwg.mxu0
    %v141 = vsel %vm118, %v109, 0
    %143 = vmatpush.msra.mxu0 0.0
    %144 = vmatpush.msra.mxu0 0.0
    %145 = vmatpush.msra.mxu0 0.0
    %146 = vmatpush.msra.mxu0 0.0
    %147 = vmatpush.msra.mxu0 0.0
    %148 = vmatpush.msra.mxu0 0.0
    %149 = vmatpush.msra.mxu0 0.0
    %150 = vmatpush.msra.mxu0 0.0
    %151 = vmatpush.msra.mxu0 0.0
    %152 = vmatpush.msra.mxu0 0.0
    %153 = vmatpush.msra.mxu0 0.0
    %154 = vmatpush.msra.mxu0 0.0
    %155 = vmatpush.msra.mxu0 0.0
    %156 = vmatpush.msra.mxu0 0.0
    %157 = vmatpush.msra.mxu0 0.0
    %158 = vmatpush.msra.mxu0 %v52
    %159 = vmatmul.f32.gmra.mxu0 %v141
    %v160 = vpop.f32.mrf.mxu0
    %v161 = vadd.f32 0.0, %v160
    %162 = vdwg.mxu0
    %v163 = vld [vmem:[#allocation4] sm:$0x3]
    %165 = vset.pattern.permute.xlu0 0
    %166 = vperm.xlu0 %165, %v83
    %v167 = vpop.permute.xlu0 %166
    %v169 = vmul.f32 %v167, %v163
    %v172 = vrot.slane %v161, 7
    %v173 = vsel %vm73, %v172, %v139
    %v175 = vadd.f32 %v169, %v173
    %vm176 = vcmask 254976
    %177 = vst.msk [vmem:[#allocation4] sm:$0x3] %vm176, %v175
    %178 = vst.msk [vmem:[#allocation2] sm:$0x3] %vm116, %v80
    // Predicated region
    $region22: #{tpu_custom_call.1} parent=1 // pred_check
      %p179 = pneg %p42
    $region23: #{tpu_custom_call.1} parent=1 // pred_check_branch
      %181 = sbr.rel (%p179) target = $region25
    $region24: #{tpu_custom_call.1} parent=1 // pred_region
      %v182 = vld [vmem:[#allocation4] sm:$0x3]
      %v183 = vld [vmem:[#allocation3] sm:$0x3]
      %185 = vset.pattern.permute.xlu0 0
      %186 = vperm.xlu0 %185, %v183
      %v187 = vpop.permute.xlu0 %186
      %v189 = vrcp.pop %v187
      %v190 = vmul.f32 %v187, %v189
      %v191 = vsub.f32 1.0, %v190
      %v192 = vmul.f32 %v189, %v191
      %v193 = vadd.f32 %v189, %v192
      %vm194 = vweird.f32 %v187
      %vm195 = vweird.f32 %v189
      %vm196 = vmor %vm194, %vm195
      %v197 = vsel %vm196, %v189, %v193
      %v198 = vand.u32 2147483647, %v187
      %vm199 = vcmp.eq.f32.partialorder %v198, 8.507059e+37
      %v200 = vand.u32 %v187, 2147483648
      %v201 = vor.u32 1.1754944e-38, %v200
      %v202 = vsel %vm199, %v201, %v197
      %v203 = vmul.f32 %v182, %v202
      %204 = vst.msk [vmem:[#allocation10] sm:$0x3] %vm176, %v203
    $region25: #{tpu_custom_call.1} parent=1 // pred_fallthru
      _
    // Predicated region
    $region26: #{tpu_custom_call.1} parent=1 // pred_check
      _
    $region27: #{tpu_custom_call.1} parent=1 // pred_check_branch
      %206 = sbr.rel (0) target = $region29
    $region28: #{tpu_custom_call.1} parent=1 // pred_region
      %208 = vsyncadd [#allocation7], 0
      %s210 = sshll.u32 [#allocation10], 4
      %s211 = int_to_ptr.vmem [resolvable:$true] %s210
      %s212 = sshll.u32 %s2, 4
      %s213 = int_to_ptr.hbm [resolvable:$true] %s212
      %215 = dma.vmem_to_hbm [thread:$0]  %s211, 32, %s213, [#allocation7]
    $region29: #{tpu_custom_call.1} parent=1 // pred_fallthru
      _
    // Predicated region
    $region30: #{tpu_custom_call.1} parent=1 // pred_check
      _
    $region31: #{tpu_custom_call.1} parent=1 // pred_check_branch
      %217 = sbr.rel (0) target = $region33
    $region32: #{tpu_custom_call.1} parent=1 // pred_region
      %219 = dma.done [#allocation7], 32
    $region33: #{tpu_custom_call.1} parent=1 // pred_fallthru
      _
    %220 = vsyncpa [#allocation6], 1
    %221 = vsyncpa [#allocation9], 1
    %222 = vsyncpa [#allocation7], 1

</llo_original>
